<compile_context>
chip_gen: v7x
topology: tpu7x:2x2x1
jax: 0.10.0
libtpu: 0.0.40
codegen_flags: <defaults>
</compile_context>

<pallas_src>
import math

import jax
import jax.numpy as jnp
from jax.experimental import pallas as pl
from jax.experimental.pallas import tpu as pltpu


_LANE = 128
_MIB = 1024 * 1024


def _round_up(x, m):
    return (x + m - 1) // m * m


def _sublane_align(itemsize):
    # f32 -> 8 sublanes, bf16 -> 16, int8/fp8 -> 32 (packed layouts).
    return {4: 8, 2: 16, 1: 32}.get(itemsize, 8)


def _pick_vmem_limit():
    """Scoped-VMEM limit for this kernel, budgeted per TPU generation."""
    cap = 64 * _MIB  # conservative default (v7x per-TensorCore VMEM)
    try:
        info = pltpu.get_tpu_info()
        cap = int(getattr(info, "vmem_capacity_bytes", cap))
    except Exception:
        pass
    limit = int(cap * 0.75)  # headroom for compiler-internal scratch
    return max(32 * _MIB, min(limit, 112 * _MIB))


def _select_tiles(batch_hint, K, N, in_itemsize, budget_bytes,
                  tm_cap=512, tn_cap=512, tk_cap=1024):
    """Pick (tm, tn, tk, full_k) fitting the VMEM budget."""
    sub = _sublane_align(in_itemsize)
    kp128 = _round_up(K, _LANE)
    np128 = _round_up(N, _LANE)

    tm = min(_round_up(max(batch_hint, 1), sub), tm_cap)
    tn = min(np128, tn_cap)

    # v6e/v7x MXU is 2x256x256: prefer a 256-aligned tn when it adds no padding.
    if tn >= 256:
        tn_al = tn - tn % 256
        if tn_al >= 256 and _round_up(N, tn_al) <= _round_up(N, tn):
            tn = tn_al

    # Megacore (v7x): if the batch fits one tile, make sure the N axis has
    # >= 2 blocks so the second TensorCore gets work.
    if _round_up(max(batch_hint, 1), tm) // tm < 2:
        while _round_up(N, tn) // tn < 2 and tn > _LANE:
            new_tn = max(_LANE, (tn // 2) // _LANE * _LANE)
            if new_tn == tn:
                break
            tn = new_tn

    def vbytes(tm_, tn_, tk_):
        # double-buffered x / w / out tiles + bias row (output & bias are f32)
        return 2 * (tm_ * tk_ * in_itemsize + tk_ * tn_ * in_itemsize
                    + tm_ * tn_ * 4 + tn_ * 4)

    # Full-K fast path: no reduction axis, no accumulator, no pl.when phases.
    if vbytes(tm, tn, kp128) <= budget_bytes:
        return tm, tn, kp128, True

    tk = min(kp128, tk_cap)
    tk -= tk % _LANE
    while vbytes(tm, tn, tk) > budget_bytes and tk > _LANE:
        tk = max(_LANE, (tk // 2) // _LANE * _LANE)
    while vbytes(tm, tn, tk) > budget_bytes and tn > _LANE:
        tn = max(_LANE, (tn // 2) // _LANE * _LANE)
    while vbytes(tm, tn, tk) > budget_bytes and tm > sub:
        tm = max(sub, (tm // 2) // sub * sub)
    return tm, tn, tk, False


# ----------------------------------------------------------------------------
# Kernels (weight is pre-transposed to [K, N]; bias is a (1, tn) f32 row).
# ----------------------------------------------------------------------------

def _linear_fullk_kernel(x_ref, w_ref, b_ref, o_ref):
    # Whole K resident in VMEM: single MXU pass, no accumulator needed.
    o_ref[...] = (
        jnp.dot(x_ref[...], w_ref[...], preferred_element_type=jnp.float32)
        + b_ref[...]
    ).astype(o_ref.dtype)


def _linear_ktiled_kernel(x_ref, w_ref, b_ref, o_ref):
    # Output block index (i, j) is constant along k, so o_ref stays resident
    # across the reduction: accumulate directly into it (f32 output), no
    # separate VMEM scratch accumulator.
    k = pl.program_id(2)

    @pl.when(k == 0)
    def _():
        o_ref[...] = jnp.zeros_like(o_ref)

    o_ref[...] += jnp.dot(x_ref[...], w_ref[...],
                          preferred_element_type=jnp.float32)

    @pl.when(k == pl.num_programs(2) - 1)
    def _():
        o_ref[...] += b_ref[...]


# ----------------------------------------------------------------------------
# Parameter preparation (done ONCE per layer) + forward.
# ----------------------------------------------------------------------------

def prepare_linear_params(weights, bias=None, *, batch_hint=128,
                          compute_dtype=None,
                          tm_cap=512, tn_cap=512, tk_cap=1024):
    """Pre-transpose / pad / cast the static weights once and pick the tiling.

    Args:
      weights: [out_features, in_features] (PyTorch convention).
      bias: [out_features] or None.
      batch_hint: expected batch size (used only for tile selection).
      compute_dtype: optional low-precision MXU input dtype (e.g. jnp.bfloat16);
        accumulation and the output stay f32.
    """
    N, K = weights.shape
    in_dtype = jnp.dtype(compute_dtype) if compute_dtype is not None else jnp.dtype(weights.dtype)
    in_itemsize = in_dtype.itemsize

    vmem_limit = _pick_vmem_limit()
    tile_budget = int(vmem_limit * 0.9)
    tm, tn, tk, full_k = _select_tiles(
        batch_hint, K, N, in_itemsize, tile_budget,
        tm_cap=tm_cap, tn_cap=tn_cap, tk_cap=tk_cap)

    Kp = tk if full_k else _round_up(K, tk)
    Np = _round_up(N, tn)

    # Hoisted out of the forward path: transpose to [K, N], zero-pad, cast.
    w_t = jnp.asarray(weights).T
    w_t = jnp.pad(w_t, ((0, Kp - K), (0, Np - N))).astype(in_dtype)

    if bias is not None:
        b2d = jnp.pad(jnp.asarray(bias, jnp.float32), (0, Np - N)).reshape(1, Np)
    else:
        b2d = jnp.zeros((1, Np), jnp.float32)  # exact no-op add in f32

    return {
        "w_t": w_t, "b2d": b2d,
        "K": K, "N": N, "Kp": Kp, "Np": Np,
        "tm_cap": tm, "tn": tn, "tk": tk, "full_k": full_k,
        "in_dtype": in_dtype,
        "sub_align": _sublane_align(in_itemsize),
        "vmem_limit": vmem_limit,
    }


def linear_forward(x, params):
    """z = x @ W^T + b with prepared (transposed/padded/cast) parameters."""
    B, K = x.shape
    assert K == params["K"], "x inner dim must equal in_features"
    Kp, Np, N = params["Kp"], params["Np"], params["N"]
    tn, tk, full_k = params["tn"], params["tk"], params["full_k"]
    in_dtype = params["in_dtype"]
    sub = params["sub_align"]

    tm = min(_round_up(max(B, 1), sub), params["tm_cap"])
    Bp = _round_up(B, tm)

    x_p = x.astype(in_dtype) if x.dtype != in_dtype else x
    if Bp != B or Kp != K:
        x_p = jnp.pad(x_p, ((0, Bp - B), (0, Kp - K)))

    w_t, b2d = params["w_t"], params["b2d"]
    out_shape = jax.ShapeDtypeStruct((Bp, Np), jnp.float32)

    flops = 2 * B * N * K
    bytes_accessed = (Bp * Kp + Kp * Np) * in_dtype.itemsize + Bp * Np * 4
    cost = pl.CostEstimate(flops=flops, bytes_accessed=bytes_accessed,
                           transcendentals=0)

    if full_k:
        grid = (Bp // tm, Np // tn)
        in_specs = [
            pl.BlockSpec((tm, Kp), lambda i, j: (i, 0)),
            pl.BlockSpec((Kp, tn), lambda i, j: (0, j)),
            pl.BlockSpec((1, tn), lambda i, j: (0, j)),
        ]
        out_specs = pl.BlockSpec((tm, tn), lambda i, j: (i, j))
        kernel = _linear_fullk_kernel
        dims = ("parallel", "parallel")
    else:
        grid = (Bp // tm, Np // tn, Kp // tk)
        in_specs = [
            pl.BlockSpec((tm, tk), lambda i, j, k: (i, k)),
            pl.BlockSpec((tk, tn), lambda i, j, k: (k, j)),
            pl.BlockSpec((1, tn), lambda i, j, k: (0, j)),
        ]
        out_specs = pl.BlockSpec((tm, tn), lambda i, j, k: (i, j))
        kernel = _linear_ktiled_kernel
        dims = ("parallel", "parallel", "arbitrary")

    out = pl.pallas_call(
        kernel,
        out_shape=out_shape,
        grid_spec=pltpu.PrefetchScalarGridSpec(
            num_scalar_prefetch=0,
            grid=grid,
            in_specs=in_specs,
            out_specs=out_specs,
        ),
        compiler_params=pltpu.CompilerParams(
            dimension_semantics=dims,
            vmem_limit_bytes=params["vmem_limit"],
        ),
        cost_estimate=cost,
    )(x_p, w_t, b2d)

    if Bp != B or Np != N:
        out = out[:B, :N]
    return out


def linear_layer_forward(x, weights, bias=None, *, compute_dtype=None):
    """One-shot convenience wrapper matching the module's forward signature.

    For repeated forwards prefer prepare_linear_params(...) + linear_forward(...)
    so the weight transpose/pad/cast is done exactly once.
    """
    params = prepare_linear_params(weights, bias, batch_hint=x.shape[0],
                                   compute_dtype=compute_dtype)
    return linear_forward(x, params)


def init_linear_layer_params(key, in_features, out_features, bias=True, gain=1.0):
    """xavier_uniform_ init matching the PyTorch module."""
    a = gain * math.sqrt(6.0 / (in_features + out_features))
    w = jax.random.uniform(key, (out_features, in_features), dtype=jnp.float32,
                           minval=-a, maxval=a)
    b = jnp.zeros((out_features,), dtype=jnp.float32) if bias else None
    return w, b


if __name__ == "__main__":
    key = jax.random.PRNGKey(0)
    k_x, k_w = jax.random.split(key)

    batch = 8
    in_features = 32
    out_features = 64

    x = jax.random.normal(k_x, (batch, in_features), dtype=jnp.float32)
    weights, bias = init_linear_layer_params(k_w, in_features, out_features,
                                             bias=True, gain=1.0)
    z_ref = x @ weights.T + bias[None, :]

    # Cached-parameter path (weight transposed / padded once, reused).
    params = prepare_linear_params(weights, bias, batch_hint=batch)
    z = linear_forward(x, params)
    jax.block_until_ready(z)
    assert z.shape == (batch, out_features)
    assert jnp.allclose(z, z_ref, atol=1e-5, rtol=1e-5)

    # bias=None path of the module.
    params_nb = prepare_linear_params(weights, None, batch_hint=batch)
    z_nb = linear_forward(x, params_nb)
    jax.block_until_ready(z_nb)
    assert jnp.allclose(z_nb, x @ weights.T, atol=1e-5, rtol=1e-5)

    # One-shot convenience wrapper (matches module forward signature).
    z_once = linear_layer_forward(x, weights, bias)
    jax.block_until_ready(z_once)
    assert jnp.allclose(z_once, z_ref, atol=1e-5, rtol=1e-5)

    # Opt-in bf16 MXU path (f32 accumulation) — looser tolerance.
    params_bf16 = prepare_linear_params(weights, bias, batch_hint=batch,
                                        compute_dtype=jnp.bfloat16)
    z_bf16 = linear_forward(x, params_bf16)
    jax.block_until_ready(z_bf16)
    assert jnp.allclose(z_bf16, z_ref, atol=5e-2, rtol=5e-2)

    print("KERNEL_OK")
</pallas_src>

<mosaic_0001>
module attributes {stable_mosaic.version = 11 : i64} {
  func.func @_linear_fullk_kernel(%arg0: i32, %arg1: i32, %arg2: memref<8x128xf32, #tpu.memory_space<vmem>>, %arg3: memref<128x128xf32, #tpu.memory_space<vmem>>, %arg4: memref<1x128xf32, #tpu.memory_space<vmem>>, %arg5: memref<8x128xf32, #tpu.memory_space<vmem>>) attributes {dimension_semantics = [#tpu.dimension_semantics<parallel>, #tpu.dimension_semantics<parallel>], iteration_bounds = array<i64: 1, 1>, scalar_prefetch = 0 : i64, scratch_operands = 0 : i64, tpu.core_type = #tpu.core_type<tc>, window_params = [{transform_indices = @transform_0, window_bounds = array<i64: 8, 128>}, {transform_indices = @transform_1, window_bounds = array<i64: 128, 128>}, {transform_indices = @transform_2, window_bounds = array<i64: 1, 128>}, {transform_indices = @transform_3, window_bounds = array<i64: 8, 128>}]} {
    %c0 = arith.constant 0 : index
    %c0_0 = arith.constant 0 : index
    %0 = vector.load %arg2[%c0, %c0_0] : memref<8x128xf32, #tpu.memory_space<vmem>>, vector<8x128xf32>
    %c0_1 = arith.constant 0 : index
    %c0_2 = arith.constant 0 : index
    %1 = vector.load %arg3[%c0_1, %c0_2] : memref<128x128xf32, #tpu.memory_space<vmem>>, vector<128x128xf32>
    %cst = arith.constant dense<0.000000e+00> : vector<8x128xf32>
    %2 = tpu.matmul %0, %1, %cst {dimension_numbers = #tpu.dot_dimension_numbers<[1], [0], [0], [1], [0, 0, 1, 1], [], []>} : vector<8x128xf32>, vector<128x128xf32>, vector<8x128xf32> -> vector<8x128xf32>
    %c0_3 = arith.constant 0 : index
    %c0_4 = arith.constant 0 : index
    %3 = vector.load %arg4[%c0_3, %c0_4] : memref<1x128xf32, #tpu.memory_space<vmem>>, vector<1x128xf32>
    %4 = vector.broadcast %3 : vector<1x128xf32> to vector<8x128xf32>
    %5 = arith.addf %2, %4 : vector<8x128xf32>
    %c0_5 = arith.constant 0 : index
    %c0_6 = arith.constant 0 : index
    %6 = vector.load %arg5[%c0_5, %c0_6] : memref<8x128xf32, #tpu.memory_space<vmem>>, vector<8x128xf32>
    tpu.vector_store %arg5[%c0_5, %c0_6], %5 {strides = array<i32>} : memref<8x128xf32, #tpu.memory_space<vmem>>, vector<8x128xf32>,
    return
  }
  func.func @transform_0(%arg0: i32, %arg1: i32) -> (i32, i32) {
    %c0_i32 = arith.constant 0 : i32
    %c0_i32_0 = arith.constant 0 : i32
    return %arg0, %c0_i32 : i32, i32
  }
  func.func @transform_1(%arg0: i32, %arg1: i32) -> (i32, i32) {
    %c0_i32 = arith.constant 0 : i32
    %c0_i32_0 = arith.constant 0 : i32
    return %c0_i32, %arg1 : i32, i32
  }
  func.func @transform_2(%arg0: i32, %arg1: i32) -> (i32, i32) {
    %c0_i32 = arith.constant 0 : i32
    %c0_i32_0 = arith.constant 0 : i32
    return %c0_i32, %arg1 : i32, i32
  }
  func.func @transform_3(%arg0: i32, %arg1: i32) -> (i32, i32) {
    %c0_i32 = arith.constant 0 : i32
    return %arg0, %arg1 : i32, i32
  }
}

</mosaic_0001>

<llo_original>
// kernel: tpu_custom_call.1
$region0: #{tpu_custom_call.1}
  #allocation0 [shape = 'u32[]', space=smem, size = 0x4, offset = 0x4, fixed_abs, tag = 'smem constant byte address 0x4 - core index']
  #allocation1 [shape = 'u32[144,128]{1,0:T(1,128)}', space=vmem, size = 0x12000, scoped, tag = 'internal scratch']
  %s0 = inlined_call_operand.hbm [shape: f32[8,128], index: 0, kind: input, shape index: {}]
  %s1 = inlined_call_operand.hbm [shape: f32[128,128], index: 1, kind: input, shape index: {}]
  %s2 = inlined_call_operand.vmem [shape: f32[1,128], index: 2, kind: input, shape index: {}]
  %s3 = inlined_call_operand.hbm [shape: f32[8,128], index: 3, kind: output, shape index: {}]
  %s4 = sld [smem:[#allocation0]]
  $region30: #{tpu_custom_call.1} parent=0
    _
  %s6 = ssub.s32 1, %s4
  %s7 = scalar_select 0, %s6, %s4
  $region1: #{tpu_custom_call.1} parent=0
    #allocation2 [shape = 'u8[4096]{0}', space=vmem, size = 0x1000, scoped, tag = 'input window, operand 0, single buffered']
    #allocation3 [shape = 's32[1]{0}', space=sflag, size = 0x4, scoped, tag = 'scoped memory for tpu_custom_call.1']
    #allocation4 [shape = 's32[1]{0}', space=sflag, size = 0x4, scoped, tag = 'scoped memory for tpu_custom_call.1']
    #allocation5 [shape = 'u8[65536]{0}', space=vmem, size = 0x10000, scoped, tag = 'input window, operand 1, single buffered']
    #allocation6 [shape = 's32[1]{0}', space=sflag, size = 0x4, scoped, tag = 'scoped memory for tpu_custom_call.1']
    #allocation7 [shape = 'u8[4096]{0}', space=vmem, size = 0x1000, scoped, tag = 'output window, operand 0, single buffered']
    %8 = vsyncpa [#allocation3], 0
    %9 = vsyncpa [#allocation6], 0
    %10 = vsyncpa [#allocation4], 0
    // Predicated region
    $region2: #{tpu_custom_call.1} parent=1 // pred_check
      _
    $region3: #{tpu_custom_call.1} parent=1 // pred_check_branch
      %12 = sbr.rel (0) target = $region5
    $region4: #{tpu_custom_call.1} parent=1 // pred_region
      %s14 = ssub.s32 128, 128
      %15 = vsyncadd [#allocation3], %s14
      %s17 = sshll.u32 [#allocation2], 4
      %s18 = int_to_ptr.vmem [resolvable:$true] %s17
      %20 = dma.hbm_to_vmem [thread:$0]  %s0, 128, %s18, [#allocation3]
    $region5: #{tpu_custom_call.1} parent=1 // pred_fallthru
      _
    // Predicated region
    $region6: #{tpu_custom_call.1} parent=1 // pred_check
      _
    $region7: #{tpu_custom_call.1} parent=1 // pred_check_branch
      %22 = sbr.rel (0) target = $region9
    $region8: #{tpu_custom_call.1} parent=1 // pred_region
      %s24 = ssub.s32 2048, 2048
      %25 = vsyncadd [#allocation6], %s24
      %s26 = sshll.u32 [#allocation5], 4
      %s27 = int_to_ptr.vmem [resolvable:$true] %s26
      %32 = dma.hbm_to_vmem [thread:$0]  %s1, 2048, %s27, [#allocation6], 128, 128, 8
    $region9: #{tpu_custom_call.1} parent=1 // pred_fallthru
      _
    // Predicated region
    $region10: #{tpu_custom_call.1} parent=1 // pred_check
      _
    $region11: #{tpu_custom_call.1} parent=1 // pred_check_branch
      %34 = sbr.rel (0) target = $region13
    $region12: #{tpu_custom_call.1} parent=1 // pred_region
      _
    $region13: #{tpu_custom_call.1} parent=1 // pred_fallthru
      _
    // Predicated region
    $region14: #{tpu_custom_call.1} parent=1 // pred_check
      _
    $region15: #{tpu_custom_call.1} parent=1 // pred_check_branch
      %36 = sbr.rel (0) target = $region17
    $region16: #{tpu_custom_call.1} parent=1 // pred_region
      %37 = dma.done [#allocation3], 128
    $region17: #{tpu_custom_call.1} parent=1 // pred_fallthru
      _
    // Predicated region
    $region18: #{tpu_custom_call.1} parent=1 // pred_check
      _
    $region19: #{tpu_custom_call.1} parent=1 // pred_check_branch
      %39 = sbr.rel (0) target = $region21
    $region20: #{tpu_custom_call.1} parent=1 // pred_region
      %40 = dma.done [#allocation6], 2048
    $region21: #{tpu_custom_call.1} parent=1 // pred_fallthru
      _
    %v41 = vld [vmem:[#allocation2] sm:$0xff]
    %v42 = vld [vmem:[#allocation5] sm:$0xff]
    %v43 = vld [vmem:[#allocation5 + $0x8] sm:$0xff]
    %v44 = vld [vmem:[#allocation5 + $0x10] sm:$0xff]
    %v45 = vld [vmem:[#allocation5 + $0x18] sm:$0xff]
    %v46 = vld [vmem:[#allocation5 + $0x20] sm:$0xff]
    %v47 = vld [vmem:[#allocation5 + $0x28] sm:$0xff]
    %v48 = vld [vmem:[#allocation5 + $0x30] sm:$0xff]
    %v49 = vld [vmem:[#allocation5 + $0x38] sm:$0xff]
    %v50 = vld [vmem:[#allocation5 + $0x40] sm:$0xff]
    %v51 = vld [vmem:[#allocation5 + $0x48] sm:$0xff]
    %v52 = vld [vmem:[#allocation5 + $0x50] sm:$0xff]
    %v53 = vld [vmem:[#allocation5 + $0x58] sm:$0xff]
    %v54 = vld [vmem:[#allocation5 + $0x60] sm:$0xff]
    %v55 = vld [vmem:[#allocation5 + $0x68] sm:$0xff]
    %v56 = vld [vmem:[#allocation5 + $0x70] sm:$0xff]
    %v57 = vld [vmem:[#allocation5 + $0x78] sm:$0xff]
    %v58 = vld [vmem:[%s2] sm:$0x1]
    %v60 = vlaneseq
    %v61 = vshrl.u32 %v60, 7
    %v62 = vsub.s32 0, %v61
    %v63 = vrot.slane %v58, %v62
    %65 = vmatprep.subr.mxu0 0.0
    %66 = vmatpush1.msra.mxu0 %v42
    %67 = vmatprep.subr.mxu0 0.0
    %68 = vmatpush1.msra.mxu0 %v43
    %69 = vmatprep.subr.mxu0 0.0
    %70 = vmatpush1.msra.mxu0 %v44
    %71 = vmatprep.subr.mxu0 0.0
    %72 = vmatpush1.msra.mxu0 %v45
    %73 = vmatprep.subr.mxu0 0.0
    %74 = vmatpush1.msra.mxu0 %v46
    %75 = vmatprep.subr.mxu0 0.0
    %76 = vmatpush1.msra.mxu0 %v47
    %77 = vmatprep.subr.mxu0 0.0
    %78 = vmatpush1.msra.mxu0 %v48
    %79 = vmatprep.subr.mxu0 0.0
    %80 = vmatpush1.msra.mxu0 %v49
    %81 = vmatprep.subr.mxu0 0.0
    %82 = vmatpush1.msra.mxu0 %v50
    %83 = vmatprep.subr.mxu0 0.0
    %84 = vmatpush1.msra.mxu0 %v51
    %85 = vmatprep.subr.mxu0 0.0
    %86 = vmatpush1.msra.mxu0 %v52
    %87 = vmatprep.subr.mxu0 0.0
    %88 = vmatpush1.msra.mxu0 %v53
    %89 = vmatprep.subr.mxu0 0.0
    %90 = vmatpush1.msra.mxu0 %v54
    %91 = vmatprep.subr.mxu0 0.0
    %92 = vmatpush1.msra.mxu0 %v55
    %93 = vmatprep.subr.mxu0 0.0
    %94 = vmatpush1.msra.mxu0 %v56
    %95 = vmatprep.subr.mxu0 0.0
    %96 = vmatpush1.msra.mxu0 %v57
    %97 = vmatprep.subr.mxu0 0.0
    %98 = vmatpush1.msra.mxu0 0.0
    %99 = vmatprep.subr.mxu0 0.0
    %100 = vmatpush1.msra.mxu0 0.0
    %101 = vmatprep.subr.mxu0 0.0
    %102 = vmatpush1.msra.mxu0 0.0
    %103 = vmatprep.subr.mxu0 0.0
    %104 = vmatpush1.msra.mxu0 0.0
    %105 = vmatprep.subr.mxu0 0.0
    %106 = vmatpush1.msra.mxu0 0.0
    %107 = vmatprep.subr.mxu0 0.0
    %108 = vmatpush1.msra.mxu0 0.0
    %109 = vmatprep.subr.mxu0 0.0
    %110 = vmatpush1.msra.mxu0 0.0
    %111 = vmatprep.subr.mxu0 0.0
    %112 = vmatpush1.msra.mxu0 0.0
    %113 = vmatprep.subr.mxu0 0.0
    %114 = vmatpush1.msra.mxu0 0.0
    %115 = vmatprep.subr.mxu0 0.0
    %116 = vmatpush1.msra.mxu0 0.0
    %117 = vmatprep.subr.mxu0 0.0
    %118 = vmatpush1.msra.mxu0 0.0
    %119 = vmatprep.subr.mxu0 0.0
    %120 = vmatpush1.msra.mxu0 0.0
    %121 = vmatprep.subr.mxu0 0.0
    %122 = vmatpush1.msra.mxu0 0.0
    %123 = vmatprep.subr.mxu0 0.0
    %124 = vmatpush1.msra.mxu0 0.0
    %125 = vmatprep.subr.mxu0 0.0
    %126 = vmatpush1.msra.mxu0 0.0
    %127 = vmatprep.subr.mxu0 0.0
    %128 = vmatpush1.msra.mxu0 0.0
    %129 = vmatprep.mubr.f32.mxu0 0.0
    %130 = vmatmul.mubr.f32.gmra.mrb[0].mxu0 %v41
    %v131 = vpop.f32.mrb[0].mxu0
    %v132 = vadd.f32 %v63, %v131
    %v133 = vpop.f32.mrb[0].mxu0
    %134 = vdwg.mxu0
    %135 = vst [vmem:[#allocation7] sm:$0xff] %v132
    // Predicated region
    $region22: #{tpu_custom_call.1} parent=1 // pred_check
      _
    $region23: #{tpu_custom_call.1} parent=1 // pred_check_branch
      %137 = sbr.rel (0) target = $region25
    $region24: #{tpu_custom_call.1} parent=1 // pred_region
      %s139 = ssub.s32 128, 128
      %140 = vsyncadd [#allocation4], %s139
      %s142 = sshll.u32 [#allocation7], 4
      %s143 = int_to_ptr.vmem [resolvable:$true] %s142
      %145 = dma.vmem_to_hbm [thread:$0]  %s143, 128, %s3, [#allocation4]
    $region25: #{tpu_custom_call.1} parent=1 // pred_fallthru
      _
    // Predicated region
    $region26: #{tpu_custom_call.1} parent=1 // pred_check
      _
    $region27: #{tpu_custom_call.1} parent=1 // pred_check_branch
      %147 = sbr.rel (0) target = $region29
    $region28: #{tpu_custom_call.1} parent=1 // pred_region
      %148 = dma.done [#allocation4], 128
    $region29: #{tpu_custom_call.1} parent=1 // pred_fallthru
      _
    %149 = vsyncpa [#allocation3], 1
    %150 = vsyncpa [#allocation6], 1
    %151 = vsyncpa [#allocation4], 1

</llo_original>
